<compile_context>
chip_gen: v5e
topology: v5e:2x2
jax: 0.10.0
libtpu: 0.0.40
codegen_flags: <defaults>
</compile_context>

<pallas_src>
import jax
import jax.numpy as jnp
from jax.experimental import pallas as pl
from jax.experimental.pallas import tpu as pltpu

CPAD = 8  # per-tap channel rows in the conv contraction (Cin padded to a full sublane tile)


# ----------------------------------------------------------------------------
# Pallas kernel: full CombinationModule forward for one batch chunk
# ----------------------------------------------------------------------------
def _combination_kernel(x2p_ref, u_ref, wf_ref, bup_ref, x1_ref, wc1_ref,
                        wc2_ref, bcat_ref, o_ref, taps_ref):
    # x2p_ref : (NB*CPAD, S2)   bf16  inputs2, channel rows zero-padded to CPAD per batch
    # u_ref   : (S2, 9*HW)      bf16  upsample x 3x3-tap-shift x zero-pad operator
    # wf_ref  : (Cout, 9*CPAD)  bf16  3x3 weights, tap-major / channel-minor, zero-padded
    # bup_ref : (Cout, 1)       f32
    # x1_ref  : (C1, NB*HW)     bf16  inputs1, channel-first, batch stacked on lanes
    # wc1_ref : (Cout, C1)      bf16  1x1 weights acting on inputs1 channels
    # wc2_ref : (Cout, Cout)    bf16  1x1 weights acting on outputs2 channels
    # bcat_ref: (Cout, 1)       f32
    # o_ref   : (NB, Cout, HW)  f32   NCHW output block (lane-dense HW stores)
    # taps_ref: (9*CPAD, NB*HW) f32   scratch: taps in 3x3-contraction layout
    nb, _, hw = o_ref.shape
    cpad = x2p_ref.shape[0] // nb
    ntap = u_ref.shape[1] // hw

    # (1) Bilinear upsample + 3x3 tap shifts + conv zero-pad: ONE lane-dense MXU matmul.
    #     rows = (batch, channel), lanes = (tap, pixel); f32 accumulation.
    t_all = jnp.dot(x2p_ref[...], u_ref[...], preferred_element_type=jnp.float32)

    # (2) Re-tile into conv-contraction order (tap-major channel rows, batch-major lanes).
    #     Every block is a full (CPAD, HW) = (8, 256) f32 tile: pure aligned VMEM copies.
    for t in range(ntap):
        for n in range(nb):
            taps_ref[t * cpad:(t + 1) * cpad, n * hw:(n + 1) * hw] = (
                t_all[n * cpad:(n + 1) * cpad, t * hw:(t + 1) * hw])

    # (3) 3x3 conv + bias + ReLU as ONE (Cout, 9*CPAD) @ (9*CPAD, NB*HW) matmul.
    taps = taps_ref[...].astype(wf_ref.dtype)
    out_up = jnp.maximum(
        jnp.dot(wf_ref[...], taps, preferred_element_type=jnp.float32) + bup_ref[...],
        0.0)                                                        # (Cout, NB*HW) f32

    # (4) Channel concat + 1x1 conv + bias + ReLU as a split contraction (no concat built).
    acc = (jnp.dot(wc1_ref[...], x1_ref[...], preferred_element_type=jnp.float32)
           + jnp.dot(wc2_ref[...], out_up.astype(wc2_ref.dtype),
                     preferred_element_type=jnp.float32)
           + bcat_ref[...])
    out = jnp.maximum(acc, 0.0)                                     # (Cout, NB*HW) f32

    # (5) Lane-dense per-batch stores straight into NCHW block layout (no transpose).
    for n in range(nb):
        o_ref[n] = out[:, n * hw:(n + 1) * hw].astype(o_ref.dtype)


# ----------------------------------------------------------------------------
# One-time host-side folding helpers
# ----------------------------------------------------------------------------
def _bilinear_matrix(dst, src):
    """(dst, src) interpolation matrix for bilinear upsampling, align_corners=True
    (== torch.nn.functional.upsample_bilinear)."""
    coords = jnp.linspace(0.0, float(src - 1), dst, dtype=jnp.float32)
    lo = jnp.clip(jnp.floor(coords).astype(jnp.int32), 0, src - 1)
    hi = jnp.clip(lo + 1, 0, src - 1)
    w = coords - lo.astype(jnp.float32)
    m = jnp.zeros((dst, src), jnp.float32)
    m = m.at[jnp.arange(dst), lo].add(1.0 - w)
    m = m.at[jnp.arange(dst), hi].add(w)
    return m


def _tap_operator(h1, w1, h2, w2):
    """(H2*W2, 9*H1*W1) operator: column block t = 3*dh+dw maps flattened inputs2 spatial
    values to the (dh, dw)-shifted, zero-padded, bilinear-upsampled map."""
    a_h = jnp.pad(_bilinear_matrix(h1, h2), ((1, 1), (0, 0)))     # (H1+2, H2)
    a_w = jnp.pad(_bilinear_matrix(w1, w2), ((1, 1), (0, 0)))     # (W1+2, W2)
    blocks = []
    for dh in range(3):
        for dw in range(3):
            m_t = jnp.kron(a_h[dh:dh + h1, :], a_w[dw:dw + w1, :])  # (H1*W1, H2*W2)
            blocks.append(m_t.T)                                    # (H2*W2, H1*W1)
    return jnp.concatenate(blocks, axis=1)                          # (H2*W2, 9*H1*W1)


def build_combination_forward(w_up, b_up, w_cat, b_cat, x1_shape, x2_shape, *,
                              batch_block=None, compute_dtype=jnp.bfloat16):
    """Fold weights / operators ONCE and return a jitted forward(inputs1, inputs2).

    w_up: (Cout, Cin, 3, 3) OIHW; b_up: (Cout,); w_cat: (Cout, C1+Cout, 1, 1); b_cat: (Cout,)
    x1_shape = (N, C1, H1, W1); x2_shape = (N, Cin, H2, W2)
    batch_block: batch elements per grid step.  Default None = all N in one step (best on
      single-TensorCore v5e/v6e).  On v7x pass N // 2 so both TensorCores get a chunk
      (keep batch_block even so bf16 row blocks stay tile-aligned).
    """
    n, c1, h1, w1 = x1_shape
    n2, cin, h2, w2 = x2_shape
    assert n == n2 and cin <= CPAD and w_cat.shape[1] == c1 + w_up.shape[0]
    cout = w_up.shape[0]
    hw, s2 = h1 * w1, h2 * w2
    nb = n if batch_block is None else batch_block
    assert n % nb == 0
    grid = (n // nb,)
    cdt = compute_dtype

    # ---- one-time folding (eager; nothing below is in the per-call path) ----
    u_op = _tap_operator(h1, w1, h2, w2).astype(cdt)                       # (S2, 9*HW)
    wf = jnp.pad(jnp.transpose(w_up.astype(jnp.float32), (0, 2, 3, 1)),    # (Cout,3,3,Cin)
                 ((0, 0), (0, 0), (0, 0), (0, CPAD - cin))
                 ).reshape(cout, 9 * CPAD).astype(cdt)                     # (Cout, 9*CPAD)
    w_cat2d = w_cat.astype(jnp.float32).reshape(cout, c1 + cout)
    wc1 = w_cat2d[:, :c1].astype(cdt)                                      # acts on inputs1
    wc2 = w_cat2d[:, c1:].astype(cdt)                                      # acts on outputs2
    bup = b_up.astype(jnp.float32).reshape(cout, 1)
    bcat = b_cat.astype(jnp.float32).reshape(cout, 1)

    flops = 2 * n * (CPAD * s2 * 9 * hw + cout * 9 * CPAD * hw + cout * (c1 + cout) * hw)
    bytes_accessed = int((n * CPAD * s2 + u_op.size + wf.size + c1 * n * hw
                          + wc1.size + wc2.size) * 2 + (2 * cout + n * cout * hw) * 4)

    kernel = pl.pallas_call(
        _combination_kernel,
        out_shape=jax.ShapeDtypeStruct((n, cout, hw), jnp.float32),
        grid=grid,
        in_specs=[
            pl.BlockSpec((nb * CPAD, s2), lambda g: (g, 0)),       # inputs2, channel-padded
            pl.BlockSpec((s2, 9 * hw), lambda g: (0, 0)),          # folded upsample+tap op
            pl.BlockSpec((cout, 9 * CPAD), lambda g: (0, 0)),      # folded 3x3 weights
            pl.BlockSpec((cout, 1), lambda g: (0, 0)),             # b_up
            pl.BlockSpec((c1, nb * hw), lambda g: (0, g)),         # inputs1 channel-first
            pl.BlockSpec((cout, c1), lambda g: (0, 0)),            # w_cat[:, :C1]
            pl.BlockSpec((cout, cout), lambda g: (0, 0)),          # w_cat[:, C1:]
            pl.BlockSpec((cout, 1), lambda g: (0, 0)),             # b_cat
        ],
        out_specs=pl.BlockSpec((nb, cout, hw), lambda g: (g, 0, 0)),
        scratch_shapes=[pltpu.VMEM((9 * CPAD, nb * hw), jnp.float32)],
        compiler_params=pltpu.CompilerParams(dimension_semantics=("parallel",)),
        cost_estimate=pl.CostEstimate(flops=flops, transcendentals=0,
                                      bytes_accessed=bytes_accessed),
    )

    @jax.jit
    def forward(inputs1, inputs2):
        # Per-call prep is only reshape / cast / tiny pad & transpose (a few KB of data).
        x1b = jnp.transpose(inputs1.astype(cdt).reshape(n, c1, hw),
                            (1, 0, 2)).reshape(c1, n * hw)
        x2p = jnp.pad(inputs2.astype(cdt).reshape(n, cin, s2),
                      ((0, 0), (0, CPAD - cin), (0, 0))).reshape(n * CPAD, s2)
        out = kernel(x2p, u_op, wf, bup, x1b, wc1, wc2, bcat)
        return out.reshape(n, cout, h1, w1)      # already NCHW, lane-dense stores

    return forward


# ----------------------------------------------------------------------------
# Pure-JAX reference (standard XLA convs, f32) for a correctness guard
# ----------------------------------------------------------------------------
def _reference_forward(inputs1, inputs2, w_up, b_up, w_cat, b_cat):
    hp = jax.lax.Precision.HIGHEST
    x1 = inputs1.astype(jnp.float32)
    x2 = inputs2.astype(jnp.float32)
    _, _, h1, w1 = x1.shape
    _, _, h2, w2 = x2.shape
    a_h = _bilinear_matrix(h1, h2)
    a_w = _bilinear_matrix(w1, w2)
    up = jnp.einsum('uh,vw,nchw->ncuv', a_h, a_w, x2, precision=hp)
    conv = jax.lax.conv_general_dilated(
        up, w_up.astype(jnp.float32), (1, 1), ((1, 1), (1, 1)),
        dimension_numbers=('NCHW', 'OIHW', 'NCHW'), precision=hp)
    out_up = jnp.maximum(conv + b_up[None, :, None, None], 0.0)
    cat = jnp.concatenate([x1, out_up], axis=1)
    conv2 = jax.lax.conv_general_dilated(
        cat, w_cat.astype(jnp.float32), (1, 1), ((0, 0), (0, 0)),
        dimension_numbers=('NCHW', 'OIHW', 'NCHW'), precision=hp)
    return jnp.maximum(conv2 + b_cat[None, :, None, None], 0.0)


# ----------------------------------------------------------------------------
# Main
# ----------------------------------------------------------------------------
if __name__ == "__main__":
    # module config: CombinationModule(in_size=4, out_size=8, cat_size=12)
    in_size, out_size = 4, 8
    c1 = 4                      # channels of inputs1
    cat_size = c1 + out_size    # 12

    N, H1, W1 = 2, 16, 16       # inputs1 spatial
    H2, W2 = 8, 8               # inputs2 spatial (upsampled to inputs1 size)

    key = jax.random.PRNGKey(0)
    k1, k2, k3, k4, k5, k6 = jax.random.split(key, 6)

    # Parameters in PyTorch nn.Conv2d (OIHW) layout.
    w_up = jax.random.normal(k1, (out_size, in_size, 3, 3), jnp.float32) * 0.1
    b_up = jax.random.normal(k2, (out_size,), jnp.float32) * 0.1
    w_cat = jax.random.normal(k3, (out_size, cat_size, 1, 1), jnp.float32) * 0.1
    b_cat = jax.random.normal(k4, (out_size,), jnp.float32) * 0.1

    # Inputs in PyTorch NCHW convention.
    inputs1 = jax.random.normal(k5, (N, c1, H1, W1), jnp.float32)
    inputs2 = jax.random.normal(k6, (N, in_size, H2, W2), jnp.float32)

    forward = build_combination_forward(
        w_up, b_up, w_cat, b_cat, inputs1.shape, inputs2.shape)
    out = jax.block_until_ready(forward(inputs1, inputs2))

    assert out.shape == (N, out_size, H1, W1), out.shape
    assert bool(jnp.all(jnp.isfinite(out)))
    assert bool(jnp.all(out >= 0.0))  # final ReLU

    ref = jax.block_until_ready(
        _reference_forward(inputs1, inputs2, w_up, b_up, w_cat, b_cat))
    max_err = float(jnp.max(jnp.abs(out - ref)))
    assert max_err < 5e-2, max_err   # bf16 operands, f32 accumulation

    print("KERNEL_OK")
</pallas_src>

<mosaic_0001>
module attributes {stable_mosaic.version = 11 : i64} {
  func.func @_combination_kernel(%arg0: i32, %arg1: memref<16x64xbf16, #tpu.memory_space<vmem>>, %arg2: memref<64x2304xbf16, #tpu.memory_space<vmem>>, %arg3: memref<8x72xbf16, #tpu.memory_space<vmem>>, %arg4: memref<8x1xf32, #tpu.memory_space<vmem>>, %arg5: memref<4x512xbf16, #tpu.memory_space<vmem>>, %arg6: memref<8x4xbf16, #tpu.memory_space<vmem>>, %arg7: memref<8x8xbf16, #tpu.memory_space<vmem>>, %arg8: memref<8x1xf32, #tpu.memory_space<vmem>>, %arg9: memref<2x8x256xf32, #tpu.memory_space<vmem>>, %arg10: memref<72x512xf32, #tpu.memory_space<vmem>>) attributes {dimension_semantics = [#tpu.dimension_semantics<parallel>], iteration_bounds = array<i64: 1>, scalar_prefetch = 0 : i64, scratch_operands = 1 : i64, tpu.core_type = #tpu.core_type<tc>, window_params = [{transform_indices = @transform_0, window_bounds = array<i64: 16, 64>}, {pipeline_mode = #tpu.pipeline_mode<synchronous>, transform_indices = @transform_1, window_bounds = array<i64: 64, 2304>}, {pipeline_mode = #tpu.pipeline_mode<synchronous>, transform_indices = @transform_2, window_bounds = array<i64: 8, 72>}, {pipeline_mode = #tpu.pipeline_mode<synchronous>, transform_indices = @transform_3, window_bounds = array<i64: 8, 1>}, {transform_indices = @transform_4, window_bounds = array<i64: 4, 512>}, {pipeline_mode = #tpu.pipeline_mode<synchronous>, transform_indices = @transform_5, window_bounds = array<i64: 8, 4>}, {pipeline_mode = #tpu.pipeline_mode<synchronous>, transform_indices = @transform_6, window_bounds = array<i64: 8, 8>}, {pipeline_mode = #tpu.pipeline_mode<synchronous>, transform_indices = @transform_7, window_bounds = array<i64: 8, 1>}, {transform_indices = @transform_8, window_bounds = array<i64: 2, 8, 256>}]} {
    %c0 = arith.constant 0 : index
    %c0_0 = arith.constant 0 : index
    %0 = vector.load %arg1[%c0, %c0_0] : memref<16x64xbf16, #tpu.memory_space<vmem>>, vector<16x64xbf16>
    %c0_1 = arith.constant 0 : index
    %c0_2 = arith.constant 0 : index
    %1 = vector.load %arg2[%c0_1, %c0_2] : memref<64x2304xbf16, #tpu.memory_space<vmem>>, vector<64x2304xbf16>
    %cst = arith.constant dense<0.000000e+00> : vector<16x2304xf32>
    %2 = tpu.matmul %0, %1, %cst {dimension_numbers = #tpu.dot_dimension_numbers<[1], [0], [0], [1], [0, 0, 1, 1], [], []>} : vector<16x64xbf16>, vector<64x2304xbf16>, vector<16x2304xf32> -> vector<16x2304xf32>
    %3 = vector.extract_strided_slice %2 {offsets = [0, 0], sizes = [8, 256], strides = [1, 1]} : vector<16x2304xf32> to vector<8x256xf32>
    %c0_3 = arith.constant 0 : index
    %c0_4 = arith.constant 0 : index
    %4 = vector.load %arg10[%c0_3, %c0_4] : memref<72x512xf32, #tpu.memory_space<vmem>>, vector<8x256xf32>
    tpu.vector_store %arg10[%c0_3, %c0_4], %3 {strides = array<i32>} : memref<72x512xf32, #tpu.memory_space<vmem>>, vector<8x256xf32>,
    %5 = vector.extract_strided_slice %2 {offsets = [8, 0], sizes = [8, 256], strides = [1, 1]} : vector<16x2304xf32> to vector<8x256xf32>
    %c0_5 = arith.constant 0 : index
    %c256 = arith.constant 256 : index
    %6 = vector.load %arg10[%c0_5, %c256] : memref<72x512xf32, #tpu.memory_space<vmem>>, vector<8x256xf32>
    tpu.vector_store %arg10[%c0_5, %c256], %5 {strides = array<i32>} : memref<72x512xf32, #tpu.memory_space<vmem>>, vector<8x256xf32>,
    %7 = vector.extract_strided_slice %2 {offsets = [0, 256], sizes = [8, 256], strides = [1, 1]} : vector<16x2304xf32> to vector<8x256xf32>
    %c8 = arith.constant 8 : index
    %c0_6 = arith.constant 0 : index
    %8 = vector.load %arg10[%c8, %c0_6] : memref<72x512xf32, #tpu.memory_space<vmem>>, vector<8x256xf32>
    tpu.vector_store %arg10[%c8, %c0_6], %7 {strides = array<i32>} : memref<72x512xf32, #tpu.memory_space<vmem>>, vector<8x256xf32>,
    %9 = vector.extract_strided_slice %2 {offsets = [8, 256], sizes = [8, 256], strides = [1, 1]} : vector<16x2304xf32> to vector<8x256xf32>
    %c8_7 = arith.constant 8 : index
    %c256_8 = arith.constant 256 : index
    %10 = vector.load %arg10[%c8_7, %c256_8] : memref<72x512xf32, #tpu.memory_space<vmem>>, vector<8x256xf32>
    tpu.vector_store %arg10[%c8_7, %c256_8], %9 {strides = array<i32>} : memref<72x512xf32, #tpu.memory_space<vmem>>, vector<8x256xf32>,
    %11 = vector.extract_strided_slice %2 {offsets = [0, 512], sizes = [8, 256], strides = [1, 1]} : vector<16x2304xf32> to vector<8x256xf32>
    %c16 = arith.constant 16 : index
    %c0_9 = arith.constant 0 : index
    %12 = vector.load %arg10[%c16, %c0_9] : memref<72x512xf32, #tpu.memory_space<vmem>>, vector<8x256xf32>
    tpu.vector_store %arg10[%c16, %c0_9], %11 {strides = array<i32>} : memref<72x512xf32, #tpu.memory_space<vmem>>, vector<8x256xf32>,
    %13 = vector.extract_strided_slice %2 {offsets = [8, 512], sizes = [8, 256], strides = [1, 1]} : vector<16x2304xf32> to vector<8x256xf32>
    %c16_10 = arith.constant 16 : index
    %c256_11 = arith.constant 256 : index
    %14 = vector.load %arg10[%c16_10, %c256_11] : memref<72x512xf32, #tpu.memory_space<vmem>>, vector<8x256xf32>
    tpu.vector_store %arg10[%c16_10, %c256_11], %13 {strides = array<i32>} : memref<72x512xf32, #tpu.memory_space<vmem>>, vector<8x256xf32>,
    %15 = vector.extract_strided_slice %2 {offsets = [0, 768], sizes = [8, 256], strides = [1, 1]} : vector<16x2304xf32> to vector<8x256xf32>
    %c24 = arith.constant 24 : index
    %c0_12 = arith.constant 0 : index
    %16 = vector.load %arg10[%c24, %c0_12] : memref<72x512xf32, #tpu.memory_space<vmem>>, vector<8x256xf32>
    tpu.vector_store %arg10[%c24, %c0_12], %15 {strides = array<i32>} : memref<72x512xf32, #tpu.memory_space<vmem>>, vector<8x256xf32>,
    %17 = vector.extract_strided_slice %2 {offsets = [8, 768], sizes = [8, 256], strides = [1, 1]} : vector<16x2304xf32> to vector<8x256xf32>
    %c24_13 = arith.constant 24 : index
    %c256_14 = arith.constant 256 : index
    %18 = vector.load %arg10[%c24_13, %c256_14] : memref<72x512xf32, #tpu.memory_space<vmem>>, vector<8x256xf32>
    tpu.vector_store %arg10[%c24_13, %c256_14], %17 {strides = array<i32>} : memref<72x512xf32, #tpu.memory_space<vmem>>, vector<8x256xf32>,
    %19 = vector.extract_strided_slice %2 {offsets = [0, 1024], sizes = [8, 256], strides = [1, 1]} : vector<16x2304xf32> to vector<8x256xf32>
    %c32 = arith.constant 32 : index
    %c0_15 = arith.constant 0 : index
    %20 = vector.load %arg10[%c32, %c0_15] : memref<72x512xf32, #tpu.memory_space<vmem>>, vector<8x256xf32>
    tpu.vector_store %arg10[%c32, %c0_15], %19 {strides = array<i32>} : memref<72x512xf32, #tpu.memory_space<vmem>>, vector<8x256xf32>,
    %21 = vector.extract_strided_slice %2 {offsets = [8, 1024], sizes = [8, 256], strides = [1, 1]} : vector<16x2304xf32> to vector<8x256xf32>
    %c32_16 = arith.constant 32 : index
    %c256_17 = arith.constant 256 : index
    %22 = vector.load %arg10[%c32_16, %c256_17] : memref<72x512xf32, #tpu.memory_space<vmem>>, vector<8x256xf32>
    tpu.vector_store %arg10[%c32_16, %c256_17], %21 {strides = array<i32>} : memref<72x512xf32, #tpu.memory_space<vmem>>, vector<8x256xf32>,
    %23 = vector.extract_strided_slice %2 {offsets = [0, 1280], sizes = [8, 256], strides = [1, 1]} : vector<16x2304xf32> to vector<8x256xf32>
    %c40 = arith.constant 40 : index
    %c0_18 = arith.constant 0 : index
    %24 = vector.load %arg10[%c40, %c0_18] : memref<72x512xf32, #tpu.memory_space<vmem>>, vector<8x256xf32>
    tpu.vector_store %arg10[%c40, %c0_18], %23 {strides = array<i32>} : memref<72x512xf32, #tpu.memory_space<vmem>>, vector<8x256xf32>,
    %25 = vector.extract_strided_slice %2 {offsets = [8, 1280], sizes = [8, 256], strides = [1, 1]} : vector<16x2304xf32> to vector<8x256xf32>
    %c40_19 = arith.constant 40 : index
    %c256_20 = arith.constant 256 : index
    %26 = vector.load %arg10[%c40_19, %c256_20] : memref<72x512xf32, #tpu.memory_space<vmem>>, vector<8x256xf32>
    tpu.vector_store %arg10[%c40_19, %c256_20], %25 {strides = array<i32>} : memref<72x512xf32, #tpu.memory_space<vmem>>, vector<8x256xf32>,
    %27 = vector.extract_strided_slice %2 {offsets = [0, 1536], sizes = [8, 256], strides = [1, 1]} : vector<16x2304xf32> to vector<8x256xf32>
    %c48 = arith.constant 48 : index
    %c0_21 = arith.constant 0 : index
    %28 = vector.load %arg10[%c48, %c0_21] : memref<72x512xf32, #tpu.memory_space<vmem>>, vector<8x256xf32>
    tpu.vector_store %arg10[%c48, %c0_21], %27 {strides = array<i32>} : memref<72x512xf32, #tpu.memory_space<vmem>>, vector<8x256xf32>,
    %29 = vector.extract_strided_slice %2 {offsets = [8, 1536], sizes = [8, 256], strides = [1, 1]} : vector<16x2304xf32> to vector<8x256xf32>
    %c48_22 = arith.constant 48 : index
    %c256_23 = arith.constant 256 : index
    %30 = vector.load %arg10[%c48_22, %c256_23] : memref<72x512xf32, #tpu.memory_space<vmem>>, vector<8x256xf32>
    tpu.vector_store %arg10[%c48_22, %c256_23], %29 {strides = array<i32>} : memref<72x512xf32, #tpu.memory_space<vmem>>, vector<8x256xf32>,
    %31 = vector.extract_strided_slice %2 {offsets = [0, 1792], sizes = [8, 256], strides = [1, 1]} : vector<16x2304xf32> to vector<8x256xf32>
    %c56 = arith.constant 56 : index
    %c0_24 = arith.constant 0 : index
    %32 = vector.load %arg10[%c56, %c0_24] : memref<72x512xf32, #tpu.memory_space<vmem>>, vector<8x256xf32>
    tpu.vector_store %arg10[%c56, %c0_24], %31 {strides = array<i32>} : memref<72x512xf32, #tpu.memory_space<vmem>>, vector<8x256xf32>,
    %33 = vector.extract_strided_slice %2 {offsets = [8, 1792], sizes = [8, 256], strides = [1, 1]} : vector<16x2304xf32> to vector<8x256xf32>
    %c56_25 = arith.constant 56 : index
    %c256_26 = arith.constant 256 : index
    %34 = vector.load %arg10[%c56_25, %c256_26] : memref<72x512xf32, #tpu.memory_space<vmem>>, vector<8x256xf32>
    tpu.vector_store %arg10[%c56_25, %c256_26], %33 {strides = array<i32>} : memref<72x512xf32, #tpu.memory_space<vmem>>, vector<8x256xf32>,
    %35 = vector.extract_strided_slice %2 {offsets = [0, 2048], sizes = [8, 256], strides = [1, 1]} : vector<16x2304xf32> to vector<8x256xf32>
    %c64 = arith.constant 64 : index
    %c0_27 = arith.constant 0 : index
    %36 = vector.load %arg10[%c64, %c0_27] : memref<72x512xf32, #tpu.memory_space<vmem>>, vector<8x256xf32>
    tpu.vector_store %arg10[%c64, %c0_27], %35 {strides = array<i32>} : memref<72x512xf32, #tpu.memory_space<vmem>>, vector<8x256xf32>,
    %37 = vector.extract_strided_slice %2 {offsets = [8, 2048], sizes = [8, 256], strides = [1, 1]} : vector<16x2304xf32> to vector<8x256xf32>
    %c64_28 = arith.constant 64 : index
    %c256_29 = arith.constant 256 : index
    %38 = vector.load %arg10[%c64_28, %c256_29] : memref<72x512xf32, #tpu.memory_space<vmem>>, vector<8x256xf32>
    tpu.vector_store %arg10[%c64_28, %c256_29], %37 {strides = array<i32>} : memref<72x512xf32, #tpu.memory_space<vmem>>, vector<8x256xf32>,
    %c0_30 = arith.constant 0 : index
    %c0_31 = arith.constant 0 : index
    %39 = vector.load %arg10[%c0_30, %c0_31] : memref<72x512xf32, #tpu.memory_space<vmem>>, vector<72x512xf32>
    %40 = arith.truncf %39 : vector<72x512xf32> to vector<72x512xbf16>
    %c0_32 = arith.constant 0 : index
    %c0_33 = arith.constant 0 : index
    %41 = vector.load %arg3[%c0_32, %c0_33] : memref<8x72xbf16, #tpu.memory_space<vmem>>, vector<8x72xbf16>
    %cst_34 = arith.constant dense<0.000000e+00> : vector<8x512xf32>
    %42 = tpu.matmul %41, %40, %cst_34 {dimension_numbers = #tpu.dot_dimension_numbers<[1], [0], [0], [1], [0, 0, 1, 1], [], []>} : vector<8x72xbf16>, vector<72x512xbf16>, vector<8x512xf32> -> vector<8x512xf32>
    %c0_35 = arith.constant 0 : index
    %c0_36 = arith.constant 0 : index
    %43 = vector.load %arg4[%c0_35, %c0_36] : memref<8x1xf32, #tpu.memory_space<vmem>>, vector<8x1xf32>
    %44 = vector.broadcast %43 : vector<8x1xf32> to vector<8x512xf32>
    %45 = arith.addf %42, %44 : vector<8x512xf32>
    %cst_37 = arith.constant 0.000000e+00 : f32
    %46 = vector.broadcast %cst_37 : f32 to vector<8x512xf32>
    %47 = arith.maximumf %45, %46 : vector<8x512xf32>
    %c0_38 = arith.constant 0 : index
    %c0_39 = arith.constant 0 : index
    %48 = vector.load %arg6[%c0_38, %c0_39] : memref<8x4xbf16, #tpu.memory_space<vmem>>, vector<8x4xbf16>
    %c0_40 = arith.constant 0 : index
    %c0_41 = arith.constant 0 : index
    %49 = vector.load %arg5[%c0_40, %c0_41] : memref<4x512xbf16, #tpu.memory_space<vmem>>, vector<4x512xbf16>
    %cst_42 = arith.constant dense<0.000000e+00> : vector<8x512xf32>
    %50 = tpu.matmul %48, %49, %cst_42 {dimension_numbers = #tpu.dot_dimension_numbers<[1], [0], [0], [1], [0, 0, 1, 1], [], []>} : vector<8x4xbf16>, vector<4x512xbf16>, vector<8x512xf32> -> vector<8x512xf32>
    %c0_43 = arith.constant 0 : index
    %c0_44 = arith.constant 0 : index
    %51 = vector.load %arg7[%c0_43, %c0_44] : memref<8x8xbf16, #tpu.memory_space<vmem>>, vector<8x8xbf16>
    %52 = arith.truncf %47 : vector<8x512xf32> to vector<8x512xbf16>
    %cst_45 = arith.constant dense<0.000000e+00> : vector<8x512xf32>
    %53 = tpu.matmul %51, %52, %cst_45 {dimension_numbers = #tpu.dot_dimension_numbers<[1], [0], [0], [1], [0, 0, 1, 1], [], []>} : vector<8x8xbf16>, vector<8x512xbf16>, vector<8x512xf32> -> vector<8x512xf32>
    %54 = arith.addf %50, %53 : vector<8x512xf32>
    %c0_46 = arith.constant 0 : index
    %c0_47 = arith.constant 0 : index
    %55 = vector.load %arg8[%c0_46, %c0_47] : memref<8x1xf32, #tpu.memory_space<vmem>>, vector<8x1xf32>
    %56 = vector.broadcast %55 : vector<8x1xf32> to vector<8x512xf32>
    %57 = arith.addf %54, %56 : vector<8x512xf32>
    %cst_48 = arith.constant 0.000000e+00 : f32
    %58 = vector.broadcast %cst_48 : f32 to vector<8x512xf32>
    %59 = arith.maximumf %57, %58 : vector<8x512xf32>
    %60 = vector.extract_strided_slice %59 {offsets = [0, 0], sizes = [8, 256], strides = [1, 1]} : vector<8x512xf32> to vector<8x256xf32>
    %c0_49 = arith.constant 0 : index
    %c0_50 = arith.constant 0 : index
    %c0_51 = arith.constant 0 : index
    %61 = vector.load %arg9[%c0_49, %c0_50, %c0_51] : memref<2x8x256xf32, #tpu.memory_space<vmem>>, vector<1x8x256xf32>
    %62 = vector.shape_cast %61 : vector<1x8x256xf32> to vector<8x256xf32>
    %63 = vector.shape_cast %60 : vector<8x256xf32> to vector<1x8x256xf32>
    tpu.vector_store %arg9[%c0_49, %c0_50, %c0_51], %63 {strides = array<i32>} : memref<2x8x256xf32, #tpu.memory_space<vmem>>, vector<1x8x256xf32>,
    %64 = vector.extract_strided_slice %59 {offsets = [0, 256], sizes = [8, 256], strides = [1, 1]} : vector<8x512xf32> to vector<8x256xf32>
    %c1 = arith.constant 1 : index
    %c0_52 = arith.constant 0 : index
    %c0_53 = arith.constant 0 : index
    %65 = vector.load %arg9[%c1, %c0_52, %c0_53] : memref<2x8x256xf32, #tpu.memory_space<vmem>>, vector<1x8x256xf32>
    %66 = vector.shape_cast %65 : vector<1x8x256xf32> to vector<8x256xf32>
    %67 = vector.shape_cast %64 : vector<8x256xf32> to vector<1x8x256xf32>
    tpu.vector_store %arg9[%c1, %c0_52, %c0_53], %67 {strides = array<i32>} : memref<2x8x256xf32, #tpu.memory_space<vmem>>, vector<1x8x256xf32>,
    return
  }
  func.func @transform_0(%arg0: i32) -> (i32, i32) {
    %c0_i32 = arith.constant 0 : i32
    %c0_i32_0 = arith.constant 0 : i32
    return %arg0, %c0_i32 : i32, i32
  }
  func.func @transform_1(%arg0: i32) -> (i32, i32) {
    %c0_i32 = arith.constant 0 : i32
    %c0_i32_0 = arith.constant 0 : i32
    %c0_i32_1 = arith.constant 0 : i32
    return %c0_i32, %c0_i32_0 : i32, i32
  }
  func.func @transform_2(%arg0: i32) -> (i32, i32) {
    %c0_i32 = arith.constant 0 : i32
    %c0_i32_0 = arith.constant 0 : i32
    %c0_i32_1 = arith.constant 0 : i32
    return %c0_i32, %c0_i32_0 : i32, i32
  }
  func.func @transform_3(%arg0: i32) -> (i32, i32) {
    %c0_i32 = arith.constant 0 : i32
    %c0_i32_0 = arith.constant 0 : i32
    %c0_i32_1 = arith.constant 0 : i32
    return %c0_i32, %c0_i32_0 : i32, i32
  }
  func.func @transform_4(%arg0: i32) -> (i32, i32) {
    %c0_i32 = arith.constant 0 : i32
    %c0_i32_0 = arith.constant 0 : i32
    return %c0_i32, %arg0 : i32, i32
  }
  func.func @transform_5(%arg0: i32) -> (i32, i32) {
    %c0_i32 = arith.constant 0 : i32
    %c0_i32_0 = arith.constant 0 : i32
    %c0_i32_1 = arith.constant 0 : i32
    return %c0_i32, %c0_i32_0 : i32, i32
  }
  func.func @transform_6(%arg0: i32) -> (i32, i32) {
    %c0_i32 = arith.constant 0 : i32
    %c0_i32_0 = arith.constant 0 : i32
    %c0_i32_1 = arith.constant 0 : i32
    return %c0_i32, %c0_i32_0 : i32, i32
  }
  func.func @transform_7(%arg0: i32) -> (i32, i32) {
    %c0_i32 = arith.constant 0 : i32
    %c0_i32_0 = arith.constant 0 : i32
    %c0_i32_1 = arith.constant 0 : i32
    return %c0_i32, %c0_i32_0 : i32, i32
  }
  func.func @transform_8(%arg0: i32) -> (i32, i32, i32) {
    %c0_i32 = arith.constant 0 : i32
    %c0_i32_0 = arith.constant 0 : i32
    %c0_i32_1 = arith.constant 0 : i32
    return %arg0, %c0_i32, %c0_i32_0 : i32, i32, i32
  }
}

</mosaic_0001>

<llo_original>
// kernel: forward.1
$region0: #{forward.1}
  #allocation0 [shape = 'u32[]', space=smem, size = 0x4, offset = 0x4, fixed_abs, tag = 'smem constant byte address 0x4 - core index']
  #allocation1 [shape = 'u32[72,128]{1,0:T(1,128)}', space=vmem, size = 0x9000, scoped, tag = 'internal scratch']
  #allocation2 [shape = 'f32[72,512]{1,0:T(8,128)}', space=vmem, size = 0x24000, scoped, tag = 'scratch operand']
  %s0 = inlined_call_operand.vmem [shape: bf16[16,64], index: 0, kind: input, shape index: {}]
  %s1 = inlined_call_operand.hbm [shape: bf16[64,2304], index: 1, kind: input, shape index: {}]
  %s2 = inlined_call_operand.vmem [shape: bf16[8,72], index: 2, kind: input, shape index: {}]
  %s3 = inlined_call_operand.vmem [shape: f32[8,1], index: 3, kind: input, shape index: {}]
  %s4 = inlined_call_operand.vmem [shape: bf16[4,512], index: 4, kind: input, shape index: {}]
  %s5 = inlined_call_operand.vmem [shape: bf16[8,4], index: 5, kind: input, shape index: {}]
  %s6 = inlined_call_operand.vmem [shape: bf16[8,8], index: 6, kind: input, shape index: {}]
  %s7 = inlined_call_operand.vmem [shape: f32[8,1], index: 7, kind: input, shape index: {}]
  %s8 = inlined_call_operand.vmem [shape: f32[2,8,256], index: 8, kind: output, shape index: {}]
  %s9 = sld [smem:[#allocation0]]
  $region46: #{forward.1} parent=0
    _
  %s11 = ssub.s32 1, %s9
  %s12 = scalar_select 0, %s11, %s9
  $region1: #{forward.1} parent=0
    #allocation3 [shape = 'u8[294912]{0}', space=vmem, size = 0x48000, scoped, tag = 'input window, operand 1, single buffered']
    #allocation4 [shape = 's32[1]{0}', space=sflag, size = 0x4, scoped, tag = 'scoped memory for forward.1']
    %13 = vsyncpa [#allocation4], 0
    // Predicated region
    $region2: #{forward.1} parent=1 // pred_check
      _
    $region3: #{forward.1} parent=1 // pred_check_branch
      %15 = sbr.rel (0) target = $region5
    $region4: #{forward.1} parent=1 // pred_region
      _
    $region5: #{forward.1} parent=1 // pred_fallthru
      _
    // Predicated region
    $region6: #{forward.1} parent=1 // pred_check
      _
    $region7: #{forward.1} parent=1 // pred_check_branch
      %17 = sbr.rel (0) target = $region9
    $region8: #{forward.1} parent=1 // pred_region
      %19 = vsyncadd [#allocation4], 0
      %s20 = sshll.u32 %s1, 4
      %s21 = int_to_ptr.hbm [resolvable:$true] %s20
      %s22 = sshll.u32 [#allocation3], 4
      %s23 = int_to_ptr.vmem [resolvable:$true] %s22
      %28 = dma.hbm_to_vmem [thread:$0]  %s21, 9216, %s23, [#allocation4], 1152, 1152, 72
    $region9: #{forward.1} parent=1 // pred_fallthru
      _
    // Predicated region
    $region10: #{forward.1} parent=1 // pred_check
      _
    $region11: #{forward.1} parent=1 // pred_check_branch
      %30 = sbr.rel (0) target = $region13
    $region12: #{forward.1} parent=1 // pred_region
      _
    $region13: #{forward.1} parent=1 // pred_fallthru
      _
    // Predicated region
    $region14: #{forward.1} parent=1 // pred_check
      _
    $region15: #{forward.1} parent=1 // pred_check_branch
      %32 = sbr.rel (0) target = $region17
    $region16: #{forward.1} parent=1 // pred_region
      _
    $region17: #{forward.1} parent=1 // pred_fallthru
      _
    // Predicated region
    $region18: #{forward.1} parent=1 // pred_check
      _
    $region19: #{forward.1} parent=1 // pred_check_branch
      %34 = sbr.rel (0) target = $region21
    $region20: #{forward.1} parent=1 // pred_region
      _
    $region21: #{forward.1} parent=1 // pred_fallthru
      _
    // Predicated region
    $region22: #{forward.1} parent=1 // pred_check
      _
    $region23: #{forward.1} parent=1 // pred_check_branch
      %36 = sbr.rel (0) target = $region25
    $region24: #{forward.1} parent=1 // pred_region
      _
    $region25: #{forward.1} parent=1 // pred_fallthru
      _
    // Predicated region
    $region26: #{forward.1} parent=1 // pred_check
      _
    $region27: #{forward.1} parent=1 // pred_check_branch
      %38 = sbr.rel (0) target = $region29
    $region28: #{forward.1} parent=1 // pred_region
      _
    $region29: #{forward.1} parent=1 // pred_fallthru
      _
    // Predicated region
    $region30: #{forward.1} parent=1 // pred_check
      _
    $region31: #{forward.1} parent=1 // pred_check_branch
      %40 = sbr.rel (0) target = $region33
    $region32: #{forward.1} parent=1 // pred_region
      _
    $region33: #{forward.1} parent=1 // pred_fallthru
      _
    // Predicated region
    $region34: #{forward.1} parent=1 // pred_check
      _
    $region35: #{forward.1} parent=1 // pred_check_branch
      %42 = sbr.rel (0) target = $region37
    $region36: #{forward.1} parent=1 // pred_region
      %44 = dma.done [#allocation4], 9216
    $region37: #{forward.1} parent=1 // pred_fallthru
      _
    %v46 = vld [vmem:[%s0] sm:$0xf]
    %v47 = vld [vmem:[%s0 + $0x4] sm:$0xf]
    %v48 = vld [vmem:[#allocation3] sm:$0xff]
    %v49 = vld [vmem:[#allocation3 + $0x8] sm:$0xff]
    %v50 = vld [vmem:[#allocation3 + $0x10] sm:$0xff]
    %v51 = vld [vmem:[#allocation3 + $0x18] sm:$0xff]
    %v52 = vld [vmem:[#allocation3 + $0x20] sm:$0xff]
    %v53 = vld [vmem:[#allocation3 + $0x28] sm:$0xff]
    %v54 = vld [vmem:[#allocation3 + $0x30] sm:$0xff]
    %v55 = vld [vmem:[#allocation3 + $0x38] sm:$0xff]
    %v56 = vld [vmem:[#allocation3 + $0x40] sm:$0xff]
    %v57 = vld [vmem:[#allocation3 + $0x48] sm:$0xff]
    %v58 = vld [vmem:[#allocation3 + $0x50] sm:$0xff]
    %v59 = vld [vmem:[#allocation3 + $0x58] sm:$0xff]
    %v60 = vld [vmem:[#allocation3 + $0x60] sm:$0xff]
    %v61 = vld [vmem:[#allocation3 + $0x68] sm:$0xff]
    %v62 = vld [vmem:[#allocation3 + $0x70] sm:$0xff]
    %v63 = vld [vmem:[#allocation3 + $0x78] sm:$0xff]
    %v64 = vld [vmem:[#allocation3 + $0x80] sm:$0xff]
    %v65 = vld [vmem:[#allocation3 + $0x88] sm:$0xff]
    %v66 = vld [vmem:[#allocation3 + $0x90] sm:$0xff]
    %v67 = vld [vmem:[#allocation3 + $0x98] sm:$0xff]
    %v68 = vld [vmem:[#allocation3 + $0xa0] sm:$0xff]
    %v69 = vld [vmem:[#allocation3 + $0xa8] sm:$0xff]
    %v70 = vld [vmem:[#allocation3 + $0xb0] sm:$0xff]
    %v71 = vld [vmem:[#allocation3 + $0xb8] sm:$0xff]
    %v72 = vld [vmem:[#allocation3 + $0xc0] sm:$0xff]
    %v73 = vld [vmem:[#allocation3 + $0xc8] sm:$0xff]
    %v74 = vld [vmem:[#allocation3 + $0xd0] sm:$0xff]
    %v75 = vld [vmem:[#allocation3 + $0xd8] sm:$0xff]
    %v76 = vld [vmem:[#allocation3 + $0xe0] sm:$0xff]
    %v77 = vld [vmem:[#allocation3 + $0xe8] sm:$0xff]
    %v78 = vld [vmem:[#allocation3 + $0xf0] sm:$0xff]
    %v79 = vld [vmem:[#allocation3 + $0xf8] sm:$0xff]
    %v80 = vld [vmem:[#allocation3 + $0x100] sm:$0xff]
    %v81 = vld [vmem:[#allocation3 + $0x108] sm:$0xff]
    %v82 = vld [vmem:[#allocation3 + $0x110] sm:$0xff]
    %v83 = vld [vmem:[#allocation3 + $0x118] sm:$0xff]
    %v84 = vld [vmem:[#allocation3 + $0x120] sm:$0xff]
    %v85 = vld [vmem:[#allocation3 + $0x128] sm:$0xff]
    %v86 = vld [vmem:[#allocation3 + $0x130] sm:$0xff]
    %v87 = vld [vmem:[#allocation3 + $0x138] sm:$0xff]
    %v88 = vld [vmem:[#allocation3 + $0x140] sm:$0xff]
    %v89 = vld [vmem:[#allocation3 + $0x148] sm:$0xff]
    %v90 = vld [vmem:[#allocation3 + $0x150] sm:$0xff]
    %v91 = vld [vmem:[#allocation3 + $0x158] sm:$0xff]
    %v92 = vld [vmem:[#allocation3 + $0x160] sm:$0xff]
    %v93 = vld [vmem:[#allocation3 + $0x168] sm:$0xff]
    %v94 = vld [vmem:[#allocation3 + $0x170] sm:$0xff]
    %v95 = vld [vmem:[#allocation3 + $0x178] sm:$0xff]
    %v96 = vld [vmem:[#allocation3 + $0x180] sm:$0xff]
    %v97 = vld [vmem:[#allocation3 + $0x188] sm:$0xff]
    %v98 = vld [vmem:[#allocation3 + $0x190] sm:$0xff]
    %v99 = vld [vmem:[#allocation3 + $0x198] sm:$0xff]
    %v100 = vld [vmem:[#allocation3 + $0x1a0] sm:$0xff]
    %v101 = vld [vmem:[#allocation3 + $0x1a8] sm:$0xff]
    %v102 = vld [vmem:[#allocation3 + $0x1b0] sm:$0xff]
    %v103 = vld [vmem:[#allocation3 + $0x1b8] sm:$0xff]
    %v104 = vld [vmem:[#allocation3 + $0x1c0] sm:$0xff]
    %v105 = vld [vmem:[#allocation3 + $0x1c8] sm:$0xff]
    %v106 = vld [vmem:[#allocation3 + $0x1d0] sm:$0xff]
    %v107 = vld [vmem:[#allocation3 + $0x1d8] sm:$0xff]
    %v108 = vld [vmem:[#allocation3 + $0x1e0] sm:$0xff]
    %v109 = vld [vmem:[#allocation3 + $0x1e8] sm:$0xff]
    %v110 = vld [vmem:[#allocation3 + $0x1f0] sm:$0xff]
    %v111 = vld [vmem:[#allocation3 + $0x1f8] sm:$0xff]
    %v112 = vld [vmem:[#allocation3 + $0x200] sm:$0xff]
    %v113 = vld [vmem:[#allocation3 + $0x208] sm:$0xff]
    %v114 = vld [vmem:[#allocation3 + $0x210] sm:$0xff]
    %v115 = vld [vmem:[#allocation3 + $0x218] sm:$0xff]
    %v116 = vld [vmem:[#allocation3 + $0x220] sm:$0xff]
    %v117 = vld [vmem:[#allocation3 + $0x228] sm:$0xff]
    %v118 = vld [vmem:[#allocation3 + $0x230] sm:$0xff]
    %v119 = vld [vmem:[#allocation3 + $0x238] sm:$0xff]
    %v122 = vunpack.c.l.b16 %v46
    %v123 = vunpack.c.l.b16 %v47
    %v124 = vpack.c.b16 %v123, %v122
    %v197 = vunpack.c.l.b16 %v48
    %v198 = vunpack.c.h.b16 %v48
    %v199 = vunpack.c.l.b16 %v49
    %v200 = vunpack.c.h.b16 %v49
    %v201 = vunpack.c.l.b16 %v50
    %v202 = vunpack.c.h.b16 %v50
    %v203 = vunpack.c.l.b16 %v51
    %v204 = vunpack.c.h.b16 %v51
    %v205 = vunpack.c.l.b16 %v52
    %v206 = vunpack.c.h.b16 %v52
    %v207 = vunpack.c.l.b16 %v53
    %v208 = vunpack.c.h.b16 %v53
    %v209 = vunpack.c.l.b16 %v54
    %v210 = vunpack.c.h.b16 %v54
    %v211 = vunpack.c.l.b16 %v55
    %v212 = vunpack.c.h.b16 %v55
    %v213 = vunpack.c.l.b16 %v56
    %v214 = vunpack.c.h.b16 %v56
    %v215 = vunpack.c.l.b16 %v57
    %v216 = vunpack.c.h.b16 %v57
    %v217 = vunpack.c.l.b16 %v58
    %v218 = vunpack.c.h.b16 %v58
    %v219 = vunpack.c.l.b16 %v59
    %v220 = vunpack.c.h.b16 %v59
    %v221 = vunpack.c.l.b16 %v60
    %v222 = vunpack.c.h.b16 %v60
    %v223 = vunpack.c.l.b16 %v61
    %v224 = vunpack.c.h.b16 %v61
    %v225 = vunpack.c.l.b16 %v62
    %v226 = vunpack.c.h.b16 %v62
    %v227 = vunpack.c.l.b16 %v63
    %v228 = vunpack.c.h.b16 %v63
    %v229 = vunpack.c.l.b16 %v64
    %v230 = vunpack.c.h.b16 %v64
    %v231 = vunpack.c.l.b16 %v65
    %v232 = vunpack.c.h.b16 %v65
    %v233 = vunpack.c.l.b16 %v66
    %v234 = vunpack.c.h.b16 %v66
    %v235 = vunpack.c.l.b16 %v67
    %v236 = vunpack.c.h.b16 %v67
    %v237 = vunpack.c.l.b16 %v68
    %v238 = vunpack.c.h.b16 %v68
    %v239 = vunpack.c.l.b16 %v69
    %v240 = vunpack.c.h.b16 %v69
    %v241 = vunpack.c.l.b16 %v70
    %v242 = vunpack.c.h.b16 %v70
    %v243 = vunpack.c.l.b16 %v71
    %v244 = vunpack.c.h.b16 %v71
    %v245 = vunpack.c.l.b16 %v72
    %v246 = vunpack.c.h.b16 %v72
    %v247 = vunpack.c.l.b16 %v73
    %v248 = vunpack.c.h.b16 %v73
    %v249 = vunpack.c.l.b16 %v74
    %v250 = vunpack.c.h.b16 %v74
    %v251 = vunpack.c.l.b16 %v75
    %v252 = vunpack.c.h.b16 %v75
    %v253 = vunpack.c.l.b16 %v76
    %v254 = vunpack.c.h.b16 %v76
    %v255 = vunpack.c.l.b16 %v77
    %v256 = vunpack.c.h.b16 %v77
    %v257 = vunpack.c.l.b16 %v78
    %v258 = vunpack.c.h.b16 %v78
    %v259 = vunpack.c.l.b16 %v79
    %v260 = vunpack.c.h.b16 %v79
    %v261 = vunpack.c.l.b16 %v80
    %v262 = vunpack.c.h.b16 %v80
    %v263 = vunpack.c.l.b16 %v81
    %v264 = vunpack.c.h.b16 %v81
    %v265 = vunpack.c.l.b16 %v82
    %v266 = vunpack.c.h.b16 %v82
    %v267 = vunpack.c.l.b16 %v83
    %v268 = vunpack.c.h.b16 %v83
    %v269 = vunpack.c.l.b16 %v84
    %v270 = vunpack.c.h.b16 %v84
    %v271 = vunpack.c.l.b16 %v85
    %v272 = vunpack.c.h.b16 %v85
    %v273 = vunpack.c.l.b16 %v86
    %v274 = vunpack.c.h.b16 %v86
    %v275 = vunpack.c.l.b16 %v87
    %v276 = vunpack.c.h.b16 %v87
    %v277 = vunpack.c.l.b16 %v88
    %v278 = vunpack.c.h.b16 %v88
    %v279 = vunpack.c.l.b16 %v89
    %v280 = vunpack.c.h.b16 %v89
    %v281 = vunpack.c.l.b16 %v90
    %v282 = vunpack.c.h.b16 %v90
    %v283 = vunpack.c.l.b16 %v91
    %v284 = vunpack.c.h.b16 %v91
    %v285 = vunpack.c.l.b16 %v92
    %v286 = vunpack.c.h.b16 %v92
    %v287 = vunpack.c.l.b16 %v93
    %v288 = vunpack.c.h.b16 %v93
    %v289 = vunpack.c.l.b16 %v94
    %v290 = vunpack.c.h.b16 %v94
    %v291 = vunpack.c.l.b16 %v95
    %v292 = vunpack.c.h.b16 %v95
    %v293 = vunpack.c.l.b16 %v96
    %v294 = vunpack.c.h.b16 %v96
    %v295 = vunpack.c.l.b16 %v97
    %v296 = vunpack.c.h.b16 %v97
    %v297 = vunpack.c.l.b16 %v98
    %v298 = vunpack.c.h.b16 %v98
    %v299 = vunpack.c.l.b16 %v99
    %v300 = vunpack.c.h.b16 %v99
    %v301 = vunpack.c.l.b16 %v100
    %v302 = vunpack.c.h.b16 %v100
    %v303 = vunpack.c.l.b16 %v101
    %v304 = vunpack.c.h.b16 %v101
    %v305 = vunpack.c.l.b16 %v102
    %v306 = vunpack.c.h.b16 %v102
    %v307 = vunpack.c.l.b16 %v103
    %v308 = vunpack.c.h.b16 %v103
    %v309 = vunpack.c.l.b16 %v104
    %v310 = vunpack.c.h.b16 %v104
    %v311 = vunpack.c.l.b16 %v105
    %v312 = vunpack.c.h.b16 %v105
    %v313 = vunpack.c.l.b16 %v106
    %v314 = vunpack.c.h.b16 %v106
    %v315 = vunpack.c.l.b16 %v107
    %v316 = vunpack.c.h.b16 %v107
    %v317 = vunpack.c.l.b16 %v108
    %v318 = vunpack.c.h.b16 %v108
    %v319 = vunpack.c.l.b16 %v109
    %v320 = vunpack.c.h.b16 %v109
    %v321 = vunpack.c.l.b16 %v110
    %v322 = vunpack.c.h.b16 %v110
    %v323 = vunpack.c.l.b16 %v111
    %v324 = vunpack.c.h.b16 %v111
    %v325 = vunpack.c.l.b16 %v112
    %v326 = vunpack.c.h.b16 %v112
    %v327 = vunpack.c.l.b16 %v113
    %v328 = vunpack.c.h.b16 %v113
    %v329 = vunpack.c.l.b16 %v114
    %v330 = vunpack.c.h.b16 %v114
    %v331 = vunpack.c.l.b16 %v115
    %v332 = vunpack.c.h.b16 %v115
    %v333 = vunpack.c.l.b16 %v116
    %v334 = vunpack.c.h.b16 %v116
    %v335 = vunpack.c.l.b16 %v117
    %v336 = vunpack.c.h.b16 %v117
    %v337 = vunpack.c.l.b16 %v118
    %v338 = vunpack.c.h.b16 %v118
    %v339 = vunpack.c.l.b16 %v119
    %v340 = vunpack.c.h.b16 %v119
    %v341 = vpack.c.b16 %v215, %v197
    %v342 = vpack.c.b16 %v216, %v198
    %v343 = vpack.c.b16 %v217, %v199
    %v344 = vpack.c.b16 %v218, %v200
    %v345 = vpack.c.b16 %v219, %v201
    %v346 = vpack.c.b16 %v220, %v202
    %v347 = vpack.c.b16 %v221, %v203
    %v348 = vpack.c.b16 %v222, %v204
    %v349 = vpack.c.b16 %v223, %v205
    %v350 = vpack.c.b16 %v224, %v206
    %v351 = vpack.c.b16 %v225, %v207
    %v352 = vpack.c.b16 %v226, %v208
    %v353 = vpack.c.b16 %v227, %v209
    %v354 = vpack.c.b16 %v228, %v210
    %v355 = vpack.c.b16 %v229, %v211
    %v356 = vpack.c.b16 %v230, %v212
    %v357 = vpack.c.b16 %v231, %v213
    %v358 = vpack.c.b16 %v232, %v214
    %v359 = vpack.c.b16 %v251, %v233
    %v360 = vpack.c.b16 %v252, %v234
    %v361 = vpack.c.b16 %v253, %v235
    %v362 = vpack.c.b16 %v254, %v236
    %v363 = vpack.c.b16 %v255, %v237
    %v364 = vpack.c.b16 %v256, %v238
    %v365 = vpack.c.b16 %v257, %v239
    %v366 = vpack.c.b16 %v258, %v240
    %v367 = vpack.c.b16 %v259, %v241
    %v368 = vpack.c.b16 %v260, %v242
    %v369 = vpack.c.b16 %v261, %v243
    %v370 = vpack.c.b16 %v262, %v244
    %v371 = vpack.c.b16 %v263, %v245
    %v372 = vpack.c.b16 %v264, %v246
    %v373 = vpack.c.b16 %v265, %v247
    %v374 = vpack.c.b16 %v266, %v248
    %v375 = vpack.c.b16 %v267, %v249
    %v376 = vpack.c.b16 %v268, %v250
    %v377 = vpack.c.b16 %v287, %v269
    %v378 = vpack.c.b16 %v288, %v270
    %v379 = vpack.c.b16 %v289, %v271
    %v380 = vpack.c.b16 %v290, %v272
    %v381 = vpack.c.b16 %v291, %v273
    %v382 = vpack.c.b16 %v292, %v274
    %v383 = vpack.c.b16 %v293, %v275
    %v384 = vpack.c.b16 %v294, %v276
    %v385 = vpack.c.b16 %v295, %v277
    %v386 = vpack.c.b16 %v296, %v278
    %v387 = vpack.c.b16 %v297, %v279
    %v388 = vpack.c.b16 %v298, %v280
    %v389 = vpack.c.b16 %v299, %v281
    %v390 = vpack.c.b16 %v300, %v282
    %v391 = vpack.c.b16 %v301, %v283
    %v392 = vpack.c.b16 %v302, %v284
    %v393 = vpack.c.b16 %v303, %v285
    %v394 = vpack.c.b16 %v304, %v286
    %v395 = vpack.c.b16 %v323, %v305
    %v396 = vpack.c.b16 %v324, %v306
    %v397 = vpack.c.b16 %v325, %v307
    %v398 = vpack.c.b16 %v326, %v308
    %v399 = vpack.c.b16 %v327, %v309
    %v400 = vpack.c.b16 %v328, %v310
    %v401 = vpack.c.b16 %v329, %v311
    %v402 = vpack.c.b16 %v330, %v312
    %v403 = vpack.c.b16 %v331, %v313
    %v404 = vpack.c.b16 %v332, %v314
    %v405 = vpack.c.b16 %v333, %v315
    %v406 = vpack.c.b16 %v334, %v316
    %v407 = vpack.c.b16 %v335, %v317
    %v408 = vpack.c.b16 %v336, %v318
    %v409 = vpack.c.b16 %v337, %v319
    %v410 = vpack.c.b16 %v338, %v320
    %v411 = vpack.c.b16 %v339, %v321
    %v412 = vpack.c.b16 %v340, %v322
    %vm485 = vcmask 523264
    %v487 = vsel %vm485, %v124, 0
    %489 = vmatpush.bf16.msra.mxu0 0
    %490 = vmatpush.bf16.msra.mxu0 0
    %491 = vmatpush.bf16.msra.mxu0 0
    %492 = vmatpush.bf16.msra.mxu0 0
    %493 = vmatpush.bf16.msra.mxu0 %v395
    %494 = vmatpush.bf16.msra.mxu0 %v377
    %495 = vmatpush.bf16.msra.mxu0 %v359
    %496 = vmatpush.bf16.msra.mxu0 %v341
    %497 = vmatmul.bf16.gmra.mxu0 %v487
    %v498 = vpop.f32.mrf.mxu0
    %v499 = vadd.f32 0.0, %v498
    %v500 = vpop.f32.mrf.mxu0
    %v501 = vadd.f32 0.0, %v500
    %502 = vdwg.mxu0
    %503 = vmatpush.bf16.msra.mxu0 0
    %504 = vmatpush.bf16.msra.mxu0 0
    %505 = vmatpush.bf16.msra.mxu0 0
    %506 = vmatpush.bf16.msra.mxu0 0
    %507 = vmatpush.bf16.msra.mxu0 %v396
    %508 = vmatpush.bf16.msra.mxu0 %v378
    %509 = vmatpush.bf16.msra.mxu0 %v360
    %510 = vmatpush.bf16.msra.mxu0 %v342
    %511 = vmatmul.bf16.gmra.mxu0 %v487
    %v512 = vpop.f32.mrf.mxu0
    %v513 = vadd.f32 0.0, %v512
    %v514 = vpop.f32.mrf.mxu0
    %v515 = vadd.f32 0.0, %v514
    %516 = vdwg.mxu0
    %517 = vmatpush.bf16.msra.mxu0 0
    %518 = vmatpush.bf16.msra.mxu0 0
    %519 = vmatpush.bf16.msra.mxu0 0
    %520 = vmatpush.bf16.msra.mxu0 0
    %521 = vmatpush.bf16.msra.mxu0 %v397
    %522 = vmatpush.bf16.msra.mxu0 %v379
    %523 = vmatpush.bf16.msra.mxu0 %v361
    %524 = vmatpush.bf16.msra.mxu0 %v343
    %525 = vmatmul.bf16.gmra.mxu0 %v487
    %v526 = vpop.f32.mrf.mxu0
    %v527 = vadd.f32 0.0, %v526
    %v528 = vpop.f32.mrf.mxu0
    %v529 = vadd.f32 0.0, %v528
    %530 = vdwg.mxu0
    %531 = vmatpush.bf16.msra.mxu0 0
    %532 = vmatpush.bf16.msra.mxu0 0
    %533 = vmatpush.bf16.msra.mxu0 0
    %534 = vmatpush.bf16.msra.mxu0 0
    %535 = vmatpush.bf16.msra.mxu0 %v398
    %536 = vmatpush.bf16.msra.mxu0 %v380
    %537 = vmatpush.bf16.msra.mxu0 %v362
    %538 = vmatpush.bf16.msra.mxu0 %v344
    %539 = vmatmul.bf16.gmra.mxu0 %v487
    %v540 = vpop.f32.mrf.mxu0
    %v541 = vadd.f32 0.0, %v540
    %v542 = vpop.f32.mrf.mxu0
    %v543 = vadd.f32 0.0, %v542
    %544 = vdwg.mxu0
    %545 = vmatpush.bf16.msra.mxu0 0
    %546 = vmatpush.bf16.msra.mxu0 0
    %547 = vmatpush.bf16.msra.mxu0 0
    %548 = vmatpush.bf16.msra.mxu0 0
    %549 = vmatpush.bf16.msra.mxu0 %v399
    %550 = vmatpush.bf16.msra.mxu0 %v381
    %551 = vmatpush.bf16.msra.mxu0 %v363
    %552 = vmatpush.bf16.msra.mxu0 %v345
    %553 = vmatmul.bf16.gmra.mxu0 %v487
    %v554 = vpop.f32.mrf.mxu0
    %v555 = vadd.f32 0.0, %v554
    %v556 = vpop.f32.mrf.mxu0
    %v557 = vadd.f32 0.0, %v556
    %558 = vdwg.mxu0
    %559 = vmatpush.bf16.msra.mxu0 0
    %560 = vmatpush.bf16.msra.mxu0 0
    %561 = vmatpush.bf16.msra.mxu0 0
    %562 = vmatpush.bf16.msra.mxu0 0
    %563 = vmatpush.bf16.msra.mxu0 %v400
    %564 = vmatpush.bf16.msra.mxu0 %v382
    %565 = vmatpush.bf16.msra.mxu0 %v364
    %566 = vmatpush.bf16.msra.mxu0 %v346
    %567 = vmatmul.bf16.gmra.mxu0 %v487
    %v568 = vpop.f32.mrf.mxu0
    %v569 = vadd.f32 0.0, %v568
    %v570 = vpop.f32.mrf.mxu0
    %v571 = vadd.f32 0.0, %v570
    %572 = vdwg.mxu0
    %573 = vmatpush.bf16.msra.mxu0 0
    %574 = vmatpush.bf16.msra.mxu0 0
    %575 = vmatpush.bf16.msra.mxu0 0
    %576 = vmatpush.bf16.msra.mxu0 0
    %577 = vmatpush.bf16.msra.mxu0 %v401
    %578 = vmatpush.bf16.msra.mxu0 %v383
    %579 = vmatpush.bf16.msra.mxu0 %v365
    %580 = vmatpush.bf16.msra.mxu0 %v347
    %581 = vmatmul.bf16.gmra.mxu0 %v487
    %v582 = vpop.f32.mrf.mxu0
    %v583 = vadd.f32 0.0, %v582
    %v584 = vpop.f32.mrf.mxu0
    %v585 = vadd.f32 0.0, %v584
    %586 = vdwg.mxu0
    %587 = vmatpush.bf16.msra.mxu0 0
    %588 = vmatpush.bf16.msra.mxu0 0
    %589 = vmatpush.bf16.msra.mxu0 0
    %590 = vmatpush.bf16.msra.mxu0 0
    %591 = vmatpush.bf16.msra.mxu0 %v402
    %592 = vmatpush.bf16.msra.mxu0 %v384
    %593 = vmatpush.bf16.msra.mxu0 %v366
    %594 = vmatpush.bf16.msra.mxu0 %v348
    %595 = vmatmul.bf16.gmra.mxu0 %v487
    %v596 = vpop.f32.mrf.mxu0
    %v597 = vadd.f32 0.0, %v596
    %v598 = vpop.f32.mrf.mxu0
    %v599 = vadd.f32 0.0, %v598
    %600 = vdwg.mxu0
    %601 = vmatpush.bf16.msra.mxu0 0
    %602 = vmatpush.bf16.msra.mxu0 0
    %603 = vmatpush.bf16.msra.mxu0 0
    %604 = vmatpush.bf16.msra.mxu0 0
    %605 = vmatpush.bf16.msra.mxu0 %v403
    %606 = vmatpush.bf16.msra.mxu0 %v385
    %607 = vmatpush.bf16.msra.mxu0 %v367
    %608 = vmatpush.bf16.msra.mxu0 %v349
    %609 = vmatmul.bf16.gmra.mxu0 %v487
    %v610 = vpop.f32.mrf.mxu0
    %v611 = vadd.f32 0.0, %v610
    %v612 = vpop.f32.mrf.mxu0
    %v613 = vadd.f32 0.0, %v612
    %614 = vdwg.mxu0
    %615 = vmatpush.bf16.msra.mxu0 0
    %616 = vmatpush.bf16.msra.mxu0 0
    %617 = vmatpush.bf16.msra.mxu0 0
    %618 = vmatpush.bf16.msra.mxu0 0
    %619 = vmatpush.bf16.msra.mxu0 %v404
    %620 = vmatpush.bf16.msra.mxu0 %v386
    %621 = vmatpush.bf16.msra.mxu0 %v368
    %622 = vmatpush.bf16.msra.mxu0 %v350
    %623 = vmatmul.bf16.gmra.mxu0 %v487
    %v624 = vpop.f32.mrf.mxu0
    %v625 = vadd.f32 0.0, %v624
    %v626 = vpop.f32.mrf.mxu0
    %v627 = vadd.f32 0.0, %v626
    %628 = vdwg.mxu0
    %629 = vmatpush.bf16.msra.mxu0 0
    %630 = vmatpush.bf16.msra.mxu0 0
    %631 = vmatpush.bf16.msra.mxu0 0
    %632 = vmatpush.bf16.msra.mxu0 0
    %633 = vmatpush.bf16.msra.mxu0 %v405
    %634 = vmatpush.bf16.msra.mxu0 %v387
    %635 = vmatpush.bf16.msra.mxu0 %v369
    %636 = vmatpush.bf16.msra.mxu0 %v351
    %637 = vmatmul.bf16.gmra.mxu0 %v487
    %v638 = vpop.f32.mrf.mxu0
    %v639 = vadd.f32 0.0, %v638
    %v640 = vpop.f32.mrf.mxu0
    %v641 = vadd.f32 0.0, %v640
    %642 = vdwg.mxu0
    %643 = vmatpush.bf16.msra.mxu0 0
    %644 = vmatpush.bf16.msra.mxu0 0
    %645 = vmatpush.bf16.msra.mxu0 0
    %646 = vmatpush.bf16.msra.mxu0 0
    %647 = vmatpush.bf16.msra.mxu0 %v406
    %648 = vmatpush.bf16.msra.mxu0 %v388
    %649 = vmatpush.bf16.msra.mxu0 %v370
    %650 = vmatpush.bf16.msra.mxu0 %v352
    %651 = vmatmul.bf16.gmra.mxu0 %v487
    %v652 = vpop.f32.mrf.mxu0
    %v653 = vadd.f32 0.0, %v652
    %v654 = vpop.f32.mrf.mxu0
    %v655 = vadd.f32 0.0, %v654
    %656 = vdwg.mxu0
    %657 = vmatpush.bf16.msra.mxu0 0
    %658 = vmatpush.bf16.msra.mxu0 0
    %659 = vmatpush.bf16.msra.mxu0 0
    %660 = vmatpush.bf16.msra.mxu0 0
    %661 = vmatpush.bf16.msra.mxu0 %v407
    %662 = vmatpush.bf16.msra.mxu0 %v389
    %663 = vmatpush.bf16.msra.mxu0 %v371
    %664 = vmatpush.bf16.msra.mxu0 %v353
    %665 = vmatmul.bf16.gmra.mxu0 %v487
    %v666 = vpop.f32.mrf.mxu0
    %v667 = vadd.f32 0.0, %v666
    %v668 = vpop.f32.mrf.mxu0
    %v669 = vadd.f32 0.0, %v668
    %670 = vdwg.mxu0
    %671 = vmatpush.bf16.msra.mxu0 0
    %672 = vmatpush.bf16.msra.mxu0 0
    %673 = vmatpush.bf16.msra.mxu0 0
    %674 = vmatpush.bf16.msra.mxu0 0
    %675 = vmatpush.bf16.msra.mxu0 %v408
    %676 = vmatpush.bf16.msra.mxu0 %v390
    %677 = vmatpush.bf16.msra.mxu0 %v372
    %678 = vmatpush.bf16.msra.mxu0 %v354
    %679 = vmatmul.bf16.gmra.mxu0 %v487
    %v680 = vpop.f32.mrf.mxu0
    %v681 = vadd.f32 0.0, %v680
    %v682 = vpop.f32.mrf.mxu0
    %v683 = vadd.f32 0.0, %v682
    %684 = vdwg.mxu0
    %685 = vmatpush.bf16.msra.mxu0 0
    %686 = vmatpush.bf16.msra.mxu0 0
    %687 = vmatpush.bf16.msra.mxu0 0
    %688 = vmatpush.bf16.msra.mxu0 0
    %689 = vmatpush.bf16.msra.mxu0 %v409
    %690 = vmatpush.bf16.msra.mxu0 %v391
    %691 = vmatpush.bf16.msra.mxu0 %v373
    %692 = vmatpush.bf16.msra.mxu0 %v355
    %693 = vmatmul.bf16.gmra.mxu0 %v487
    %v694 = vpop.f32.mrf.mxu0
    %v695 = vadd.f32 0.0, %v694
    %v696 = vpop.f32.mrf.mxu0
    %v697 = vadd.f32 0.0, %v696
    %698 = vdwg.mxu0
    %699 = vmatpush.bf16.msra.mxu0 0
    %700 = vmatpush.bf16.msra.mxu0 0
    %701 = vmatpush.bf16.msra.mxu0 0
    %702 = vmatpush.bf16.msra.mxu0 0
    %703 = vmatpush.bf16.msra.mxu0 %v410
    %704 = vmatpush.bf16.msra.mxu0 %v392
    %705 = vmatpush.bf16.msra.mxu0 %v374
    %706 = vmatpush.bf16.msra.mxu0 %v356
    %707 = vmatmul.bf16.gmra.mxu0 %v487
    %v708 = vpop.f32.mrf.mxu0
    %v709 = vadd.f32 0.0, %v708
    %v710 = vpop.f32.mrf.mxu0
    %v711 = vadd.f32 0.0, %v710
    %712 = vdwg.mxu0
    %713 = vmatpush.bf16.msra.mxu0 0
    %714 = vmatpush.bf16.msra.mxu0 0
    %715 = vmatpush.bf16.msra.mxu0 0
    %716 = vmatpush.bf16.msra.mxu0 0
    %717 = vmatpush.bf16.msra.mxu0 %v411
    %718 = vmatpush.bf16.msra.mxu0 %v393
    %719 = vmatpush.bf16.msra.mxu0 %v375
    %720 = vmatpush.bf16.msra.mxu0 %v357
    %721 = vmatmul.bf16.gmra.mxu0 %v487
    %v722 = vpop.f32.mrf.mxu0
    %v723 = vadd.f32 0.0, %v722
    %v724 = vpop.f32.mrf.mxu0
    %v725 = vadd.f32 0.0, %v724
    %726 = vdwg.mxu0
    %727 = vmatpush.bf16.msra.mxu0 0
    %728 = vmatpush.bf16.msra.mxu0 0
    %729 = vmatpush.bf16.msra.mxu0 0
    %730 = vmatpush.bf16.msra.mxu0 0
    %731 = vmatpush.bf16.msra.mxu0 %v412
    %732 = vmatpush.bf16.msra.mxu0 %v394
    %733 = vmatpush.bf16.msra.mxu0 %v376
    %734 = vmatpush.bf16.msra.mxu0 %v358
    %735 = vmatmul.bf16.gmra.mxu0 %v487
    %v736 = vpop.f32.mrf.mxu0
    %v737 = vadd.f32 0.0, %v736
    %v738 = vpop.f32.mrf.mxu0
    %v739 = vadd.f32 0.0, %v738
    %740 = vdwg.mxu0
    %741 = vst [vmem:[#allocation2] sm:$0xff] %v499
    %742 = vst [vmem:[#allocation2 + $0x8] sm:$0xff] %v513
    %743 = vst [vmem:[#allocation2 + $0x10] sm:$0xff] %v501
    %744 = vst [vmem:[#allocation2 + $0x18] sm:$0xff] %v515
    %745 = vst [vmem:[#allocation2 + $0x20] sm:$0xff] %v527
    %746 = vst [vmem:[#allocation2 + $0x28] sm:$0xff] %v541
    %747 = vst [vmem:[#allocation2 + $0x30] sm:$0xff] %v529
    %748 = vst [vmem:[#allocation2 + $0x38] sm:$0xff] %v543
    %749 = vst [vmem:[#allocation2 + $0x40] sm:$0xff] %v555
    %750 = vst [vmem:[#allocation2 + $0x48] sm:$0xff] %v569
    %751 = vst [vmem:[#allocation2 + $0x50] sm:$0xff] %v557
    %752 = vst [vmem:[#allocation2 + $0x58] sm:$0xff] %v571
    %753 = vst [vmem:[#allocation2 + $0x60] sm:$0xff] %v583
    %754 = vst [vmem:[#allocation2 + $0x68] sm:$0xff] %v597
    %755 = vst [vmem:[#allocation2 + $0x70] sm:$0xff] %v585
    %756 = vst [vmem:[#allocation2 + $0x78] sm:$0xff] %v599
    %757 = vst [vmem:[#allocation2 + $0x80] sm:$0xff] %v611
    %758 = vst [vmem:[#allocation2 + $0x88] sm:$0xff] %v625
    %759 = vst [vmem:[#allocation2 + $0x90] sm:$0xff] %v613
    %760 = vst [vmem:[#allocation2 + $0x98] sm:$0xff] %v627
    %761 = vst [vmem:[#allocation2 + $0xa0] sm:$0xff] %v639
    %762 = vst [vmem:[#allocation2 + $0xa8] sm:$0xff] %v653
    %763 = vst [vmem:[#allocation2 + $0xb0] sm:$0xff] %v641
    %764 = vst [vmem:[#allocation2 + $0xb8] sm:$0xff] %v655
    %765 = vst [vmem:[#allocation2 + $0xc0] sm:$0xff] %v667
    %766 = vst [vmem:[#allocation2 + $0xc8] sm:$0xff] %v681
    %767 = vst [vmem:[#allocation2 + $0xd0] sm:$0xff] %v669
    %768 = vst [vmem:[#allocation2 + $0xd8] sm:$0xff] %v683
    %769 = vst [vmem:[#allocation2 + $0xe0] sm:$0xff] %v695
    %770 = vst [vmem:[#allocation2 + $0xe8] sm:$0xff] %v709
    %771 = vst [vmem:[#allocation2 + $0xf0] sm:$0xff] %v697
    %772 = vst [vmem:[#allocation2 + $0xf8] sm:$0xff] %v711
    %773 = vst [vmem:[#allocation2 + $0x100] sm:$0xff] %v723
    %774 = vst [vmem:[#allocation2 + $0x108] sm:$0xff] %v737
    %775 = vst [vmem:[#allocation2 + $0x110] sm:$0xff] %v725
    %776 = vst [vmem:[#allocation2 + $0x118] sm:$0xff] %v739
    %v777 = vld [vmem:[#allocation2] sm:$0xff]
    %v778 = vld [vmem:[#allocation2 + $0x8] sm:$0xff]
    %v779 = vld [vmem:[#allocation2 + $0x10] sm:$0xff]
    %v780 = vld [vmem:[#allocation2 + $0x18] sm:$0xff]
    %v781 = vld [vmem:[#allocation2 + $0x20] sm:$0xff]
    %v782 = vld [vmem:[#allocation2 + $0x28] sm:$0xff]
    %v783 = vld [vmem:[#allocation2 + $0x30] sm:$0xff]
    %v784 = vld [vmem:[#allocation2 + $0x38] sm:$0xff]
    %v785 = vld [vmem:[#allocation2 + $0x40] sm:$0xff]
    %v786 = vld [vmem:[#allocation2 + $0x48] sm:$0xff]
    %v787 = vld [vmem:[#allocation2 + $0x50] sm:$0xff]
    %v788 = vld [vmem:[#allocation2 + $0x58] sm:$0xff]
    %v789 = vld [vmem:[#allocation2 + $0x60] sm:$0xff]
    %v790 = vld [vmem:[#allocation2 + $0x68] sm:$0xff]
    %v791 = vld [vmem:[#allocation2 + $0x70] sm:$0xff]
    %v792 = vld [vmem:[#allocation2 + $0x78] sm:$0xff]
    %v793 = vld [vmem:[#allocation2 + $0x80] sm:$0xff]
    %v794 = vld [vmem:[#allocation2 + $0x88] sm:$0xff]
    %v795 = vld [vmem:[#allocation2 + $0x90] sm:$0xff]
    %v796 = vld [vmem:[#allocation2 + $0x98] sm:$0xff]
    %v797 = vld [vmem:[#allocation2 + $0xa0] sm:$0xff]
    %v798 = vld [vmem:[#allocation2 + $0xa8] sm:$0xff]
    %v799 = vld [vmem:[#allocation2 + $0xb0] sm:$0xff]
    %v800 = vld [vmem:[#allocation2 + $0xb8] sm:$0xff]
    %v801 = vld [vmem:[#allocation2 + $0xc0] sm:$0xff]
    %v802 = vld [vmem:[#allocation2 + $0xc8] sm:$0xff]
    %v803 = vld [vmem:[#allocation2 + $0xd0] sm:$0xff]
    %v804 = vld [vmem:[#allocation2 + $0xd8] sm:$0xff]
    %v805 = vld [vmem:[#allocation2 + $0xe0] sm:$0xff]
    %v806 = vld [vmem:[#allocation2 + $0xe8] sm:$0xff]
    %v807 = vld [vmem:[#allocation2 + $0xf0] sm:$0xff]
    %v808 = vld [vmem:[#allocation2 + $0xf8] sm:$0xff]
    %v809 = vld [vmem:[#allocation2 + $0x100] sm:$0xff]
    %v810 = vld [vmem:[#allocation2 + $0x108] sm:$0xff]
    %v811 = vld [vmem:[#allocation2 + $0x110] sm:$0xff]
    %v812 = vld [vmem:[#allocation2 + $0x118] sm:$0xff]
    %v813 = vpack.c.bf16 %v781, %v777
    %v814 = vpack.c.bf16 %v782, %v778
    %v815 = vpack.c.bf16 %v783, %v779
    %v816 = vpack.c.bf16 %v784, %v780
    %v817 = vpack.c.bf16 %v789, %v785
    %v818 = vpack.c.bf16 %v790, %v786
    %v819 = vpack.c.bf16 %v791, %v787
    %v820 = vpack.c.bf16 %v792, %v788
    %v821 = vpack.c.bf16 %v797, %v793
    %v822 = vpack.c.bf16 %v798, %v794
    %v823 = vpack.c.bf16 %v799, %v795
    %v824 = vpack.c.bf16 %v800, %v796
    %v825 = vpack.c.bf16 %v805, %v801
    %v826 = vpack.c.bf16 %v806, %v802
    %v827 = vpack.c.bf16 %v807, %v803
    %v828 = vpack.c.bf16 %v808, %v804
    %v829 = vpack.c.bf16 %v809, %v809
    %v830 = vpack.c.bf16 %v810, %v810
    %v831 = vpack.c.bf16 %v811, %v811
    %v832 = vpack.c.bf16 %v812, %v812
    %v833 = vld [vmem:[%s2] sm:$0xf]
    %v834 = vld [vmem:[%s3] sm:$0xff]
    %836 = vset.pattern.permute.xlu0 0
    %837 = vperm.xlu0 %836, %v834
    %v838 = vpop.permute.xlu0 %837
    %vm840 = vcmask 588800
    %v842 = vsel %vm840, %v833, 0
    %vm844 = vcmask 1043456
    %v846 = vsel %vm844, %v829, 0
    %v849 = vsel %vm844, %v830, 0
    %v852 = vsel %vm844, %v831, 0
    %v855 = vsel %vm844, %v832, 0
    %857 = vmatpush.bf16.msra.mxu0 0
    %858 = vmatpush.bf16.msra.mxu0 0
    %859 = vmatpush.bf16.msra.mxu0 0
    %860 = vmatpush.bf16.msra.mxu0 %v846
    %861 = vmatpush.bf16.msra.mxu0 %v825
    %862 = vmatpush.bf16.msra.mxu0 %v821
    %863 = vmatpush.bf16.msra.mxu0 %v817
    %864 = vmatpush.bf16.msra.mxu0 %v813
    %865 = vmatmul.bf16.gmra.mxu0 %v842
    %v866 = vpop.f32.mrf.mxu0
    %v867 = vadd.f32 %v838, %v866
    %v868 = vpop.f32.mrf.mxu0
    %869 = vdwg.mxu0
    %870 = vmatpush.bf16.msra.mxu0 0
    %871 = vmatpush.bf16.msra.mxu0 0
    %872 = vmatpush.bf16.msra.mxu0 0
    %873 = vmatpush.bf16.msra.mxu0 %v849
    %874 = vmatpush.bf16.msra.mxu0 %v826
    %875 = vmatpush.bf16.msra.mxu0 %v822
    %876 = vmatpush.bf16.msra.mxu0 %v818
    %877 = vmatpush.bf16.msra.mxu0 %v814
    %878 = vmatmul.bf16.gmra.mxu0 %v842
    %v879 = vpop.f32.mrf.mxu0
    %v880 = vadd.f32 %v838, %v879
    %v881 = vpop.f32.mrf.mxu0
    %882 = vdwg.mxu0
    %883 = vmatpush.bf16.msra.mxu0 0
    %884 = vmatpush.bf16.msra.mxu0 0
    %885 = vmatpush.bf16.msra.mxu0 0
    %886 = vmatpush.bf16.msra.mxu0 %v852
    %887 = vmatpush.bf16.msra.mxu0 %v827
    %888 = vmatpush.bf16.msra.mxu0 %v823
    %889 = vmatpush.bf16.msra.mxu0 %v819
    %890 = vmatpush.bf16.msra.mxu0 %v815
    %891 = vmatmul.bf16.gmra.mxu0 %v842
    %v892 = vpop.f32.mrf.mxu0
    %v893 = vadd.f32 %v838, %v892
    %v894 = vpop.f32.mrf.mxu0
    %895 = vdwg.mxu0
    %896 = vmatpush.bf16.msra.mxu0 0
    %897 = vmatpush.bf16.msra.mxu0 0
    %898 = vmatpush.bf16.msra.mxu0 0
    %899 = vmatpush.bf16.msra.mxu0 %v855
    %900 = vmatpush.bf16.msra.mxu0 %v828
    %901 = vmatpush.bf16.msra.mxu0 %v824
    %902 = vmatpush.bf16.msra.mxu0 %v820
    %903 = vmatpush.bf16.msra.mxu0 %v816
    %904 = vmatmul.bf16.gmra.mxu0 %v842
    %v905 = vpop.f32.mrf.mxu0
    %v906 = vadd.f32 %v838, %v905
    %v907 = vpop.f32.mrf.mxu0
    %908 = vdwg.mxu0
    %v909 = vmax.f32 %v867, 0.0
    %v910 = vmax.f32 %v880, 0.0
    %v911 = vmax.f32 %v893, 0.0
    %v912 = vmax.f32 %v906, 0.0
    %v913 = vld [vmem:[%s5] sm:$0xf]
    %v914 = vld [vmem:[%s4] sm:$0xff]
    %v915 = vld [vmem:[%s6] sm:$0xf]
    %v916 = vpack.c.bf16 %v909, %v909
    %v917 = vpack.c.bf16 %v910, %v910
    %v918 = vpack.c.bf16 %v911, %v911
    %v919 = vpack.c.bf16 %v912, %v912
    %vm920 = vcmask 64512
    %v922 = vsel %vm920, %v915, 0
    %v925 = vsel %vm844, %v916, 0
    %v928 = vsel %vm844, %v917, 0
    %v931 = vsel %vm844, %v918, 0
    %v934 = vsel %vm844, %v919, 0
    %936 = vmatpush.bf16.msra.mxu0 0
    %937 = vmatpush.bf16.msra.mxu0 0
    %938 = vmatpush.bf16.msra.mxu0 0
    %939 = vmatpush.bf16.msra.mxu0 0
    %940 = vmatpush.bf16.msra.mxu0 0
    %941 = vmatpush.bf16.msra.mxu0 0
    %942 = vmatpush.bf16.msra.mxu0 0
    %943 = vmatpush.bf16.msra.mxu0 %v925
    %944 = vmatmul.bf16.gmra.mxu0 %v922
    %v945 = vpop.f32.mrf.mxu0
    %v946 = vadd.f32 0.0, %v945
    %v947 = vpop.f32.mrf.mxu0
    %948 = vdwg.mxu0
    %949 = vmatpush.bf16.msra.mxu0 0
    %950 = vmatpush.bf16.msra.mxu0 0
    %951 = vmatpush.bf16.msra.mxu0 0
    %952 = vmatpush.bf16.msra.mxu0 0
    %953 = vmatpush.bf16.msra.mxu0 0
    %954 = vmatpush.bf16.msra.mxu0 0
    %955 = vmatpush.bf16.msra.mxu0 0
    %956 = vmatpush.bf16.msra.mxu0 %v928
    %957 = vmatmul.bf16.gmra.mxu0 %v922
    %v958 = vpop.f32.mrf.mxu0
    %v959 = vadd.f32 0.0, %v958
    %v960 = vpop.f32.mrf.mxu0
    %961 = vdwg.mxu0
    %962 = vmatpush.bf16.msra.mxu0 0
    %963 = vmatpush.bf16.msra.mxu0 0
    %964 = vmatpush.bf16.msra.mxu0 0
    %965 = vmatpush.bf16.msra.mxu0 0
    %966 = vmatpush.bf16.msra.mxu0 0
    %967 = vmatpush.bf16.msra.mxu0 0
    %968 = vmatpush.bf16.msra.mxu0 0
    %969 = vmatpush.bf16.msra.mxu0 %v931
    %970 = vmatmul.bf16.gmra.mxu0 %v922
    %v971 = vpop.f32.mrf.mxu0
    %v972 = vadd.f32 0.0, %v971
    %v973 = vpop.f32.mrf.mxu0
    %974 = vdwg.mxu0
    %975 = vmatpush.bf16.msra.mxu0 0
    %976 = vmatpush.bf16.msra.mxu0 0
    %977 = vmatpush.bf16.msra.mxu0 0
    %978 = vmatpush.bf16.msra.mxu0 0
    %979 = vmatpush.bf16.msra.mxu0 0
    %980 = vmatpush.bf16.msra.mxu0 0
    %981 = vmatpush.bf16.msra.mxu0 0
    %982 = vmatpush.bf16.msra.mxu0 %v934
    %983 = vmatmul.bf16.gmra.mxu0 %v922
    %v984 = vpop.f32.mrf.mxu0
    %v985 = vadd.f32 0.0, %v984
    %v986 = vpop.f32.mrf.mxu0
    %987 = vdwg.mxu0
    %989 = vst [vmem:[#allocation1] ss:$4 sm:$0xff] %v914
    %v990 = vld.sshfl [vmem:[#allocation1] sm:$0xff pattern:$0x73625140]
    %v991 = vld.sshfl [vmem:[#allocation1 + $0x8] sm:$0xff pattern:$0x73625140]
    %v992 = vld.sshfl [vmem:[#allocation1 + $0x10] sm:$0xff pattern:$0x73625140]
    %v993 = vld.sshfl [vmem:[#allocation1 + $0x18] sm:$0xff pattern:$0x73625140]
    %vm994 = vcmask 31744
    %v996 = vsel %vm994, %v913, 0
    %vm998 = vcmask 1041408
    %v999 = vsel %vm998, %v990, 0
    %v1001 = vsel %vm998, %v991, 0
    %v1003 = vsel %vm998, %v992, 0
    %v1005 = vsel %vm998, %v993, 0
    %1007 = vmatpush.bf16.msra.mxu0 0
    %1008 = vmatpush.bf16.msra.mxu0 0
    %1009 = vmatpush.bf16.msra.mxu0 0
    %1010 = vmatpush.bf16.msra.mxu0 0
    %1011 = vmatpush.bf16.msra.mxu0 0
    %1012 = vmatpush.bf16.msra.mxu0 0
    %1013 = vmatpush.bf16.msra.mxu0 0
    %1014 = vmatpush.bf16.msra.mxu0 %v999
    %1015 = vmatmul.bf16.gmra.mxu0 %v996
    %v1016 = vpop.f32.mrf.mxu0
    %v1017 = vadd.f32 %v946, %v1016
    %v1018 = vpop.f32.mrf.mxu0
    %1019 = vdwg.mxu0
    %1020 = vmatpush.bf16.msra.mxu0 0
    %1021 = vmatpush.bf16.msra.mxu0 0
    %1022 = vmatpush.bf16.msra.mxu0 0
    %1023 = vmatpush.bf16.msra.mxu0 0
    %1024 = vmatpush.bf16.msra.mxu0 0
    %1025 = vmatpush.bf16.msra.mxu0 0
    %1026 = vmatpush.bf16.msra.mxu0 0
    %1027 = vmatpush.bf16.msra.mxu0 %v1001
    %1028 = vmatmul.bf16.gmra.mxu0 %v996
    %v1029 = vpop.f32.mrf.mxu0
    %v1030 = vadd.f32 %v959, %v1029
    %v1031 = vpop.f32.mrf.mxu0
    %1032 = vdwg.mxu0
    %1033 = vmatpush.bf16.msra.mxu0 0
    %1034 = vmatpush.bf16.msra.mxu0 0
    %1035 = vmatpush.bf16.msra.mxu0 0
    %1036 = vmatpush.bf16.msra.mxu0 0
    %1037 = vmatpush.bf16.msra.mxu0 0
    %1038 = vmatpush.bf16.msra.mxu0 0
    %1039 = vmatpush.bf16.msra.mxu0 0
    %1040 = vmatpush.bf16.msra.mxu0 %v1003
    %1041 = vmatmul.bf16.gmra.mxu0 %v996
    %v1042 = vpop.f32.mrf.mxu0
    %v1043 = vadd.f32 %v972, %v1042
    %v1044 = vpop.f32.mrf.mxu0
    %1045 = vdwg.mxu0
    %1046 = vmatpush.bf16.msra.mxu0 0
    %1047 = vmatpush.bf16.msra.mxu0 0
    %1048 = vmatpush.bf16.msra.mxu0 0
    %1049 = vmatpush.bf16.msra.mxu0 0
    %1050 = vmatpush.bf16.msra.mxu0 0
    %1051 = vmatpush.bf16.msra.mxu0 0
    %1052 = vmatpush.bf16.msra.mxu0 0
    %1053 = vmatpush.bf16.msra.mxu0 %v1005
    %1054 = vmatmul.bf16.gmra.mxu0 %v996
    %v1055 = vpop.f32.mrf.mxu0
    %v1056 = vadd.f32 %v985, %v1055
    %v1057 = vpop.f32.mrf.mxu0
    %1058 = vdwg.mxu0
    %v1059 = vld [vmem:[%s7] sm:$0xff]
    %1061 = vset.pattern.permute.xlu0 0
    %1062 = vperm.xlu0 %1061, %v1059
    %v1063 = vpop.permute.xlu0 %1062
    %v1065 = vadd.f32 %v1017, %v1063
    %v1066 = vadd.f32 %v1030, %v1063
    %v1067 = vadd.f32 %v1043, %v1063
    %v1068 = vadd.f32 %v1056, %v1063
    %v1069 = vmax.f32 %v1065, 0.0
    %v1070 = vmax.f32 %v1066, 0.0
    %v1071 = vmax.f32 %v1067, 0.0
    %v1072 = vmax.f32 %v1068, 0.0
    %1073 = vst [vmem:[%s8] sm:$0xff] %v1069
    %1074 = vst [vmem:[%s8 + $0x8] sm:$0xff] %v1070
    %s1075 = scalar_lea.vmem %s8, 16
    %1076 = vst [vmem:[%s1075] sm:$0xff] %v1071
    %1077 = vst [vmem:[%s1075 + $0x8] sm:$0xff] %v1072
    // Predicated region
    $region38: #{forward.1} parent=1 // pred_check
      _
    $region39: #{forward.1} parent=1 // pred_check_branch
      %1079 = sbr.rel (0) target = $region41
    $region40: #{forward.1} parent=1 // pred_region
      _
    $region41: #{forward.1} parent=1 // pred_fallthru
      _
    // Predicated region
    $region42: #{forward.1} parent=1 // pred_check
      _
    $region43: #{forward.1} parent=1 // pred_check_branch
      %1081 = sbr.rel (0) target = $region45
    $region44: #{forward.1} parent=1 // pred_region
      _
    $region45: #{forward.1} parent=1 // pred_fallthru
      _
    %1082 = vsyncpa [#allocation4], 1

</llo_original>
